<compile_context>
chip_gen: v7x
topology: tpu7x:2x2x1
jax: 0.10.0
libtpu: 0.0.40
codegen_flags: <defaults>
</compile_context>

<pallas_src>
import functools
import math

import jax
import jax.numpy as jnp
from jax.experimental import pallas as pl
from jax.experimental.pallas import tpu as pltpu

_MIB = 1024 * 1024


def _round_up(x: int, m: int) -> int:
    return ((x + m - 1) // m) * m


def _tpu_generation() -> str:
    try:
        return jax.devices()[0].device_kind.lower()
    except Exception:  # pragma: no cover - e.g. interpret mode / CPU
        return ""


def _tile_defaults():
    """Per-generation default tile sizes and a safe explicit-VMEM ceiling."""
    kind = _tpu_generation()
    if "v5" in kind:
        # 4x128^2 MXU, ~0.82 TB/s HBM; 256x512 tiles cut W/x re-streaming 2-4x.
        return 256, 512, 512, 112 * _MIB
    if "v7" in kind:
        # Big tiles are fine (working set ~10 MiB f32 double-buffered); just
        # keep any explicit limit under the 64 MiB physical VMEM per TC.
        return 512, 512, 1024, 56 * _MIB
    # v6e and fallback.
    return 512, 512, 1024, 112 * _MIB


def _linear_kernel_f32out(k_axis, x_ref, w_ref, b_ref, o_ref):
    """Accumulate straight into the (f32) output block.

    The output block index is constant along the reduction (last, 'arbitrary')
    grid axis, so the block stays resident in VMEM across k; the broadcast bias
    is the k==0 initializer, so the bias add happens exactly once per output
    tile and there is no separate finalize pass or scratch accumulator.
    """
    k = pl.program_id(k_axis)

    @pl.when(k == 0)
    def _init():
        o_ref[...] = jnp.broadcast_to(b_ref[...].astype(jnp.float32), o_ref.shape)

    o_ref[...] += jnp.dot(x_ref[...], w_ref[...], preferred_element_type=jnp.float32)


def _linear_kernel_scratch(k_axis, x_ref, w_ref, b_ref, o_ref, acc_ref):
    """Variant with an f32 VMEM accumulator, used for low-precision outputs."""
    k = pl.program_id(k_axis)

    @pl.when(k == 0)
    def _init():
        acc_ref[...] = jnp.broadcast_to(b_ref[...].astype(jnp.float32), acc_ref.shape)

    acc_ref[...] += jnp.dot(x_ref[...], w_ref[...], preferred_element_type=jnp.float32)

    @pl.when(k == pl.num_programs(k_axis) - 1)
    def _finalize():
        o_ref[...] = acc_ref[...].astype(o_ref.dtype)


def prepare_meta_linear_weight(weight):
    """Pre-transpose the (out_features, in_features) weight ONCE to (K, N).

    F.linear stores the weight as (N, K); the kernel wants a (K, N) RHS so the
    MXU lane dim is the output dim.  Doing the transpose here, at parameter
    setup time, avoids an HBM read+write of the whole weight on every forward.
    """
    return weight.T


def meta_linear(x, weight, bias, *, weight_is_transposed=False,
                compute_dtype=None, tm=None, tn=None, tk=None):
    """Equivalent of MetaLinear.forward == F.linear(x, weight, bias).

    x:      (..., K)
    weight: (N, K) [PyTorch convention], or (K, N) if weight_is_transposed=True
            (use prepare_meta_linear_weight() once at setup time).
    bias:   (N,)
    compute_dtype: None (= x.dtype) or jnp.bfloat16 for a bf16 MXU path with
            f32 accumulation.
    returns (..., N) with x's dtype.
    """
    orig_shape = x.shape
    out_dtype = x.dtype
    K = orig_shape[-1]
    x2 = x.reshape(-1, K)
    M = x2.shape[0]

    if weight_is_transposed:
        Kw, N = weight.shape
        w_t = weight
    else:
        N, Kw = weight.shape
        # Per-call transpose costs an extra HBM round-trip of the full weight;
        # prefer prepare_meta_linear_weight() once at parameter-setup time.
        w_t = weight.T
    assert Kw == K, "in_features mismatch"
    assert bias.shape == (N,), "bias shape mismatch"

    compute_dtype = jnp.dtype(compute_dtype if compute_dtype is not None else x.dtype)
    assert compute_dtype in (jnp.dtype(jnp.float32), jnp.dtype(jnp.bfloat16)), \
        "only f32 / bf16 compute paths are supported"
    c_size = compute_dtype.itemsize
    sublane = 8 if c_size == 4 else 16          # bf16 packs 16 rows per vreg

    # --- pad only to hardware minimums, then clamp tiles to the padded dims ---
    Mp = _round_up(M, sublane)
    Kp = _round_up(K, 128)
    Np = _round_up(N, 128)

    tm_d, tn_d, tk_d, vmem_cap = _tile_defaults()
    tm = (Mp if Mp <= tm_d else tm_d) if tm is None else _round_up(min(tm, Mp), sublane)
    tn = (Np if Np <= tn_d else tn_d) if tn is None else _round_up(min(tn, Np), 128)
    tk = (Kp if Kp <= tk_d else tk_d) if tk is None else _round_up(min(tk, Kp), 128)

    # Make tiles divide the padded dims; waste per dim is bounded by one tile.
    Mp, Kp, Np = _round_up(Mp, tm), _round_up(Kp, tk), _round_up(Np, tn)

    xp = x2.astype(compute_dtype)
    wp = w_t.astype(compute_dtype)
    if (Mp, Kp) != (M, K):
        xp = jnp.pad(xp, ((0, Mp - M), (0, Kp - K)))
    if (Kp, Np) != (K, N):
        wp = jnp.pad(wp, ((0, Kp - K), (0, Np - N)))
    bp = bias.astype(jnp.float32).reshape(1, N)
    if Np != N:
        bp = jnp.pad(bp, ((0, 0), (0, Np - N)))

    grid_m, grid_n, grid_k = Mp // tm, Np // tn, Kp // tk

    if grid_m == 1:
        # Small-M fast path: drop the i axis; the weight streams through VMEM
        # exactly once and grid-step overhead drops proportionally.
        grid = (grid_n, grid_k)
        k_axis = 1
        x_spec = pl.BlockSpec((tm, tk), lambda j, k: (0, k))
        w_spec = pl.BlockSpec((tk, tn), lambda j, k: (k, j))
        b_spec = pl.BlockSpec((1, tn), lambda j, k: (0, j))
        o_spec = pl.BlockSpec((tm, tn), lambda j, k: (0, j))
        dims = ("parallel", "arbitrary")
    else:
        grid = (grid_m, grid_n, grid_k)
        k_axis = 2
        x_spec = pl.BlockSpec((tm, tk), lambda i, j, k: (i, k))
        w_spec = pl.BlockSpec((tk, tn), lambda i, j, k: (k, j))
        b_spec = pl.BlockSpec((1, tn), lambda i, j, k: (0, j))
        o_spec = pl.BlockSpec((tm, tn), lambda i, j, k: (i, j))
        dims = ("parallel", "parallel", "arbitrary")
    # NOTE(v7x): megacore sharding only helps when grid_m*grid_n >= 2; for a
    # single output tile one TensorCore necessarily idles.

    use_scratch = out_dtype != jnp.float32
    if use_scratch:
        kernel = functools.partial(_linear_kernel_scratch, k_axis)
        scratch_shapes = [pltpu.VMEM((tm, tn), jnp.float32)]
    else:
        kernel = functools.partial(_linear_kernel_f32out, k_axis)
        scratch_shapes = []

    # Only raise the scoped-VMEM limit if the double-buffered working set needs it.
    vmem_need = (2 * (tm * tk + tk * tn) * c_size              # x / W^T buffers
                 + 2 * tm * tn * jnp.dtype(out_dtype).itemsize  # output buffers
                 + 2 * tn * 4                                   # bias
                 + (tm * tn * 4 if use_scratch else 0))
    comp_kwargs = dict(dimension_semantics=dims)
    if vmem_need > 24 * _MIB:
        comp_kwargs["vmem_limit_bytes"] = int(min(vmem_cap, vmem_need * 3 // 2))

    out = pl.pallas_call(
        kernel,
        out_shape=jax.ShapeDtypeStruct((Mp, Np), out_dtype),
        grid=grid,
        in_specs=[x_spec, w_spec, b_spec],
        out_specs=o_spec,
        scratch_shapes=scratch_shapes,
        compiler_params=pltpu.CompilerParams(**comp_kwargs),
    )(xp, wp, bp)

    out = out[:M, :N]
    return out.reshape(*orig_shape[:-1], N)


def init_meta_linear_params(key, in_features, out_features, dtype=jnp.float32):
    """Deterministic init mirroring nn.Linear defaults (kaiming-uniform bounds)."""
    kw, kb = jax.random.split(key)
    bound = 1.0 / math.sqrt(in_features)
    weight = jax.random.uniform(
        kw, (out_features, in_features), dtype=dtype, minval=-bound, maxval=bound)
    bias = jax.random.uniform(
        kb, (out_features,), dtype=dtype, minval=-bound, maxval=bound)
    return weight, bias


# TODO(synk): MetaModule's meta-parameter plumbing (named_params / update_params /
# set_param / copy) is host-side bookkeeping with no kernel equivalent; only the
# forward pass (F.linear) is implemented as a Pallas kernel.

if __name__ == "__main__":
    key = jax.random.PRNGKey(0)
    k_x, k_p, k_x2, k_p2 = jax.random.split(key, 4)

    # --- test 1: module-typical small shape, small-M fast path (2-D grid) ---
    batch, seq, in_features, out_features = 4, 8, 32, 64
    x = jax.random.normal(k_x, (batch, seq, in_features), dtype=jnp.float32)
    weight, bias = init_meta_linear_params(k_p, in_features, out_features)
    w_t = prepare_meta_linear_weight(weight)   # transpose ONCE, not per forward

    y = meta_linear(x, w_t, bias, weight_is_transposed=True)
    y = jax.block_until_ready(y)
    y_ref = x @ weight.T + bias
    assert y.shape == (batch, seq, out_features)
    assert jnp.allclose(y, y_ref, atol=1e-5, rtol=1e-5), "f32 mismatch vs reference"

    # bf16 compute path (halved HBM bytes, native MXU rate), f32 accumulation.
    y_bf16 = meta_linear(x, w_t, bias, weight_is_transposed=True,
                         compute_dtype=jnp.bfloat16)
    y_bf16 = jax.block_until_ready(y_bf16)
    assert jnp.allclose(y_bf16, y_ref, atol=3e-2, rtol=3e-2), "bf16 mismatch vs reference"

    # --- test 2: exercise the 3-D grid + K-accumulation path with tiny tiles ---
    M2, K2, N2 = 16, 256, 256
    x2 = jax.random.normal(k_x2, (M2, K2), dtype=jnp.float32)
    weight2, bias2 = init_meta_linear_params(k_p2, K2, N2)
    w2_t = prepare_meta_linear_weight(weight2)
    y2 = meta_linear(x2, w2_t, bias2, weight_is_transposed=True,
                     tm=8, tn=128, tk=128)     # grid = (2, 2, 2)
    y2 = jax.block_until_ready(y2)
    y2_ref = x2 @ weight2.T + bias2
    assert y2.shape == (M2, N2)
    assert jnp.allclose(y2, y2_ref, atol=1e-4, rtol=1e-4), "3-D grid mismatch vs reference"

    print("KERNEL_OK")
</pallas_src>

<mosaic_0001>
module attributes {stable_mosaic.version = 11 : i64} {
  func.func @_linear_kernel_f32out(%arg0: i32, %arg1: i32, %arg2: memref<32x128xf32, #tpu.memory_space<vmem>>, %arg3: memref<128x128xf32, #tpu.memory_space<vmem>>, %arg4: memref<1x128xf32, #tpu.memory_space<vmem>>, %arg5: memref<32x128xf32, #tpu.memory_space<vmem>>) attributes {dimension_semantics = [#tpu.dimension_semantics<parallel>, #tpu.dimension_semantics<arbitrary>], iteration_bounds = array<i64: 1, 1>, scalar_prefetch = 0 : i64, scratch_operands = 0 : i64, tpu.core_type = #tpu.core_type<tc>, window_params = [{transform_indices = @transform_0, window_bounds = array<i64: 32, 128>}, {transform_indices = @transform_1, window_bounds = array<i64: 128, 128>}, {transform_indices = @transform_2, window_bounds = array<i64: 1, 128>}, {transform_indices = @transform_3, window_bounds = array<i64: 32, 128>}]} {
    %c0_i32 = arith.constant 0 : i32
    %0 = arith.cmpi eq, %arg1, %c0_i32 : i32
    %1 = arith.extui %0 : i1 to i32
    %c0_i32_0 = arith.constant 0 : i32
    %2 = arith.cmpi ne, %1, %c0_i32_0 : i32
    scf.if %2 {
      %c0_8 = arith.constant 0 : index
      %c0_9 = arith.constant 0 : index
      %9 = vector.load %arg4[%c0_8, %c0_9] : memref<1x128xf32, #tpu.memory_space<vmem>>, vector<1x128xf32>
      %10 = vector.shape_cast %9 : vector<1x128xf32> to vector<1x128xf32>
      %11 = vector.broadcast %10 : vector<1x128xf32> to vector<32x128xf32>
      %c0_10 = arith.constant 0 : index
      %c0_11 = arith.constant 0 : index
      %12 = vector.load %arg5[%c0_10, %c0_11] : memref<32x128xf32, #tpu.memory_space<vmem>>, vector<32x128xf32>
      tpu.vector_store %arg5[%c0_10, %c0_11], %11 {strides = array<i32>} : memref<32x128xf32, #tpu.memory_space<vmem>>, vector<32x128xf32>,
    } else {
    }
    %c0 = arith.constant 0 : index
    %c0_1 = arith.constant 0 : index
    %3 = vector.load %arg5[%c0, %c0_1] : memref<32x128xf32, #tpu.memory_space<vmem>>, vector<32x128xf32>
    %c0_2 = arith.constant 0 : index
    %c0_3 = arith.constant 0 : index
    %4 = vector.load %arg2[%c0_2, %c0_3] : memref<32x128xf32, #tpu.memory_space<vmem>>, vector<32x128xf32>
    %c0_4 = arith.constant 0 : index
    %c0_5 = arith.constant 0 : index
    %5 = vector.load %arg3[%c0_4, %c0_5] : memref<128x128xf32, #tpu.memory_space<vmem>>, vector<128x128xf32>
    %cst = arith.constant dense<0.000000e+00> : vector<32x128xf32>
    %6 = tpu.matmul %4, %5, %cst {dimension_numbers = #tpu.dot_dimension_numbers<[1], [0], [0], [1], [0, 0, 1, 1], [], []>} : vector<32x128xf32>, vector<128x128xf32>, vector<32x128xf32> -> vector<32x128xf32>
    %7 = arith.addf %3, %6 : vector<32x128xf32>
    %c0_6 = arith.constant 0 : index
    %c0_7 = arith.constant 0 : index
    %8 = vector.load %arg5[%c0_6, %c0_7] : memref<32x128xf32, #tpu.memory_space<vmem>>, vector<32x128xf32>
    tpu.vector_store %arg5[%c0_6, %c0_7], %7 {strides = array<i32>} : memref<32x128xf32, #tpu.memory_space<vmem>>, vector<32x128xf32>,
    return
  }
  func.func @transform_0(%arg0: i32, %arg1: i32) -> (i32, i32) {
    %c0_i32 = arith.constant 0 : i32
    %c0_i32_0 = arith.constant 0 : i32
    return %c0_i32, %arg1 : i32, i32
  }
  func.func @transform_1(%arg0: i32, %arg1: i32) -> (i32, i32) {
    %c0_i32 = arith.constant 0 : i32
    return %arg1, %arg0 : i32, i32
  }
  func.func @transform_2(%arg0: i32, %arg1: i32) -> (i32, i32) {
    %c0_i32 = arith.constant 0 : i32
    %c0_i32_0 = arith.constant 0 : i32
    return %c0_i32, %arg0 : i32, i32
  }
  func.func @transform_3(%arg0: i32, %arg1: i32) -> (i32, i32) {
    %c0_i32 = arith.constant 0 : i32
    %c0_i32_0 = arith.constant 0 : i32
    return %c0_i32, %arg0 : i32, i32
  }
}

</mosaic_0001>

<llo_original>
// kernel: tpu_custom_call.1
$region0: #{tpu_custom_call.1}
  #allocation0 [shape = 'u32[]', space=smem, size = 0x4, offset = 0x4, fixed_abs, tag = 'smem constant byte address 0x4 - core index']
  #allocation1 [shape = 'u32[144,128]{1,0:T(1,128)}', space=vmem, size = 0x12000, scoped, tag = 'internal scratch']
  %s0 = inlined_call_operand.hbm [shape: f32[32,128], index: 0, kind: input, shape index: {}]
  %s1 = inlined_call_operand.hbm [shape: f32[128,128], index: 1, kind: input, shape index: {}]
  %s2 = inlined_call_operand.vmem [shape: f32[1,128], index: 2, kind: input, shape index: {}]
  %s3 = inlined_call_operand.hbm [shape: f32[32,128], index: 3, kind: output, shape index: {}]
  %s4 = sld [smem:[#allocation0]]
  $region34: #{tpu_custom_call.1} parent=0
    _
  %s6 = ssub.s32 1, %s4
  %s7 = scalar_select 0, %s6, %s4
  $region1: #{tpu_custom_call.1} parent=0
    #allocation2 [shape = 'u8[16384]{0}', space=vmem, size = 0x4000, scoped, tag = 'input window, operand 0, single buffered']
    #allocation3 [shape = 's32[1]{0}', space=sflag, size = 0x4, scoped, tag = 'scoped memory for tpu_custom_call.1']
    #allocation4 [shape = 's32[1]{0}', space=sflag, size = 0x4, scoped, tag = 'scoped memory for tpu_custom_call.1']
    #allocation5 [shape = 'u8[65536]{0}', space=vmem, size = 0x10000, scoped, tag = 'input window, operand 1, single buffered']
    #allocation6 [shape = 's32[1]{0}', space=sflag, size = 0x4, scoped, tag = 'scoped memory for tpu_custom_call.1']
    #allocation7 [shape = 'u8[16384]{0}', space=vmem, size = 0x4000, scoped, tag = 'output window, operand 0, single buffered']
    %8 = vsyncpa [#allocation3], 0
    %9 = vsyncpa [#allocation6], 0
    %10 = vsyncpa [#allocation4], 0
    // Predicated region
    $region2: #{tpu_custom_call.1} parent=1 // pred_check
      _
    $region3: #{tpu_custom_call.1} parent=1 // pred_check_branch
      %12 = sbr.rel (0) target = $region5
    $region4: #{tpu_custom_call.1} parent=1 // pred_region
      %s14 = ssub.s32 512, 512
      %15 = vsyncadd [#allocation3], %s14
      %s16 = sshll.u32 [#allocation2], 4
      %s17 = int_to_ptr.vmem [resolvable:$true] %s16
      %22 = dma.hbm_to_vmem [thread:$0]  %s0, 512, %s17, [#allocation3], 128, 128, 8
    $region5: #{tpu_custom_call.1} parent=1 // pred_fallthru
      _
    // Predicated region
    $region6: #{tpu_custom_call.1} parent=1 // pred_check
      _
    $region7: #{tpu_custom_call.1} parent=1 // pred_check_branch
      %24 = sbr.rel (0) target = $region9
    $region8: #{tpu_custom_call.1} parent=1 // pred_region
      %s26 = ssub.s32 2048, 2048
      %27 = vsyncadd [#allocation6], %s26
      %s28 = sshll.u32 [#allocation5], 4
      %s29 = int_to_ptr.vmem [resolvable:$true] %s28
      %34 = dma.hbm_to_vmem [thread:$0]  %s1, 2048, %s29, [#allocation6], 128, 128, 8
    $region9: #{tpu_custom_call.1} parent=1 // pred_fallthru
      _
    // Predicated region
    $region10: #{tpu_custom_call.1} parent=1 // pred_check
      _
    $region11: #{tpu_custom_call.1} parent=1 // pred_check_branch
      %36 = sbr.rel (0) target = $region13
    $region12: #{tpu_custom_call.1} parent=1 // pred_region
      _
    $region13: #{tpu_custom_call.1} parent=1 // pred_fallthru
      _
    // Predicated region
    $region14: #{tpu_custom_call.1} parent=1 // pred_check
      _
    $region15: #{tpu_custom_call.1} parent=1 // pred_check_branch
      %38 = sbr.rel (0) target = $region17
    $region16: #{tpu_custom_call.1} parent=1 // pred_region
      %39 = dma.done [#allocation3], 512
    $region17: #{tpu_custom_call.1} parent=1 // pred_fallthru
      _
    // Predicated region
    $region18: #{tpu_custom_call.1} parent=1 // pred_check
      _
    $region19: #{tpu_custom_call.1} parent=1 // pred_check_branch
      %41 = sbr.rel (0) target = $region21
    $region20: #{tpu_custom_call.1} parent=1 // pred_region
      %42 = dma.done [#allocation6], 2048
    $region21: #{tpu_custom_call.1} parent=1 // pred_fallthru
      _
    %p43 = scmp.eq.s32.totalorder 0, 0
    // Predicated region
    $region22: #{tpu_custom_call.1} parent=1 // pred_check
      %p44 = pneg %p43
    $region23: #{tpu_custom_call.1} parent=1 // pred_check_branch
      %46 = sbr.rel (%p44) target = $region25
    $region24: #{tpu_custom_call.1} parent=1 // pred_region
      %v47 = vld [vmem:[%s2] sm:$0x1]
      %v49 = vlaneseq
      %v50 = vshrl.u32 %v49, 7
      %v51 = vsub.s32 0, %v50
      %v52 = vrot.slane %v47, %v51
      %54 = vst [vmem:[#allocation7] sm:$0xff] %v52
      %55 = vst [vmem:[#allocation7 + $0x8] sm:$0xff] %v52
      %56 = vst [vmem:[#allocation7 + $0x10] sm:$0xff] %v52
      %57 = vst [vmem:[#allocation7 + $0x18] sm:$0xff] %v52
    $region25: #{tpu_custom_call.1} parent=1 // pred_fallthru
      _
    %v58 = vld [vmem:[#allocation7] sm:$0xff]
    %v59 = vld [vmem:[#allocation7 + $0x8] sm:$0xff]
    %v60 = vld [vmem:[#allocation7 + $0x10] sm:$0xff]
    %v61 = vld [vmem:[#allocation7 + $0x18] sm:$0xff]
    %v62 = vld [vmem:[#allocation2] sm:$0xff]
    %v63 = vld [vmem:[#allocation2 + $0x8] sm:$0xff]
    %v64 = vld [vmem:[#allocation2 + $0x10] sm:$0xff]
    %v65 = vld [vmem:[#allocation2 + $0x18] sm:$0xff]
    %v66 = vld [vmem:[#allocation5] sm:$0xff]
    %v67 = vld [vmem:[#allocation5 + $0x8] sm:$0xff]
    %v68 = vld [vmem:[#allocation5 + $0x10] sm:$0xff]
    %v69 = vld [vmem:[#allocation5 + $0x18] sm:$0xff]
    %v70 = vld [vmem:[#allocation5 + $0x20] sm:$0xff]
    %v71 = vld [vmem:[#allocation5 + $0x28] sm:$0xff]
    %v72 = vld [vmem:[#allocation5 + $0x30] sm:$0xff]
    %v73 = vld [vmem:[#allocation5 + $0x38] sm:$0xff]
    %v74 = vld [vmem:[#allocation5 + $0x40] sm:$0xff]
    %v75 = vld [vmem:[#allocation5 + $0x48] sm:$0xff]
    %v76 = vld [vmem:[#allocation5 + $0x50] sm:$0xff]
    %v77 = vld [vmem:[#allocation5 + $0x58] sm:$0xff]
    %v78 = vld [vmem:[#allocation5 + $0x60] sm:$0xff]
    %v79 = vld [vmem:[#allocation5 + $0x68] sm:$0xff]
    %v80 = vld [vmem:[#allocation5 + $0x70] sm:$0xff]
    %v81 = vld [vmem:[#allocation5 + $0x78] sm:$0xff]
    %82 = vmatprep.subr.mxu0 0.0
    %83 = vmatpush1.msra.mxu0 %v66
    %84 = vmatprep.subr.mxu0 0.0
    %85 = vmatpush1.msra.mxu0 %v67
    %86 = vmatprep.subr.mxu0 0.0
    %87 = vmatpush1.msra.mxu0 %v68
    %88 = vmatprep.subr.mxu0 0.0
    %89 = vmatpush1.msra.mxu0 %v69
    %90 = vmatprep.subr.mxu0 0.0
    %91 = vmatpush1.msra.mxu0 %v70
    %92 = vmatprep.subr.mxu0 0.0
    %93 = vmatpush1.msra.mxu0 %v71
    %94 = vmatprep.subr.mxu0 0.0
    %95 = vmatpush1.msra.mxu0 %v72
    %96 = vmatprep.subr.mxu0 0.0
    %97 = vmatpush1.msra.mxu0 %v73
    %98 = vmatprep.subr.mxu0 0.0
    %99 = vmatpush1.msra.mxu0 %v74
    %100 = vmatprep.subr.mxu0 0.0
    %101 = vmatpush1.msra.mxu0 %v75
    %102 = vmatprep.subr.mxu0 0.0
    %103 = vmatpush1.msra.mxu0 %v76
    %104 = vmatprep.subr.mxu0 0.0
    %105 = vmatpush1.msra.mxu0 %v77
    %106 = vmatprep.subr.mxu0 0.0
    %107 = vmatpush1.msra.mxu0 %v78
    %108 = vmatprep.subr.mxu0 0.0
    %109 = vmatpush1.msra.mxu0 %v79
    %110 = vmatprep.subr.mxu0 0.0
    %111 = vmatpush1.msra.mxu0 %v80
    %112 = vmatprep.subr.mxu0 0.0
    %113 = vmatpush1.msra.mxu0 %v81
    %114 = vmatprep.subr.mxu0 0.0
    %115 = vmatpush1.msra.mxu0 0.0
    %116 = vmatprep.subr.mxu0 0.0
    %117 = vmatpush1.msra.mxu0 0.0
    %118 = vmatprep.subr.mxu0 0.0
    %119 = vmatpush1.msra.mxu0 0.0
    %120 = vmatprep.subr.mxu0 0.0
    %121 = vmatpush1.msra.mxu0 0.0
    %122 = vmatprep.subr.mxu0 0.0
    %123 = vmatpush1.msra.mxu0 0.0
    %124 = vmatprep.subr.mxu0 0.0
    %125 = vmatpush1.msra.mxu0 0.0
    %126 = vmatprep.subr.mxu0 0.0
    %127 = vmatpush1.msra.mxu0 0.0
    %128 = vmatprep.subr.mxu0 0.0
    %129 = vmatpush1.msra.mxu0 0.0
    %130 = vmatprep.subr.mxu0 0.0
    %131 = vmatpush1.msra.mxu0 0.0
    %132 = vmatprep.subr.mxu0 0.0
    %133 = vmatpush1.msra.mxu0 0.0
    %134 = vmatprep.subr.mxu0 0.0
    %135 = vmatpush1.msra.mxu0 0.0
    %136 = vmatprep.subr.mxu0 0.0
    %137 = vmatpush1.msra.mxu0 0.0
    %138 = vmatprep.subr.mxu0 0.0
    %139 = vmatpush1.msra.mxu0 0.0
    %140 = vmatprep.subr.mxu0 0.0
    %141 = vmatpush1.msra.mxu0 0.0
    %142 = vmatprep.subr.mxu0 0.0
    %143 = vmatpush1.msra.mxu0 0.0
    %144 = vmatprep.subr.mxu0 0.0
    %145 = vmatpush1.msra.mxu0 0.0
    %146 = vmatprep.mubr.f32.mxu0 0.0
    %147 = vmatmul.mubr.f32.gmra.mrb[0].mxu0 %v62
    %v148 = vpop.f32.mrb[0].mxu0
    %v149 = vadd.f32 0.0, %v148
    %v150 = vpop.f32.mrb[0].mxu0
    %151 = vmatprep.mubr.f32.mxu0 0.0
    %152 = vmatmul.mubr.f32.gmra.mrb[0].mxu0 %v63
    %v153 = vpop.f32.mrb[0].mxu0
    %v154 = vadd.f32 0.0, %v153
    %v155 = vpop.f32.mrb[0].mxu0
    %156 = vmatprep.mubr.f32.mxu0 0.0
    %157 = vmatmul.mubr.f32.gmra.mrb[0].mxu0 %v64
    %v158 = vpop.f32.mrb[0].mxu0
    %v159 = vadd.f32 0.0, %v158
    %v160 = vpop.f32.mrb[0].mxu0
    %161 = vmatprep.mubr.f32.mxu0 0.0
    %162 = vmatmul.mubr.f32.gmra.mrb[0].mxu0 %v65
    %v163 = vpop.f32.mrb[0].mxu0
    %v164 = vadd.f32 0.0, %v163
    %v165 = vpop.f32.mrb[0].mxu0
    %166 = vdwg.mxu0
    %v167 = vadd.f32 %v58, %v149
    %v168 = vadd.f32 %v59, %v154
    %v169 = vadd.f32 %v60, %v159
    %v170 = vadd.f32 %v61, %v164
    %171 = vst [vmem:[#allocation7] sm:$0xff] %v167
    %172 = vst [vmem:[#allocation7 + $0x8] sm:$0xff] %v168
    %173 = vst [vmem:[#allocation7 + $0x10] sm:$0xff] %v169
    %174 = vst [vmem:[#allocation7 + $0x18] sm:$0xff] %v170
    // Predicated region
    $region26: #{tpu_custom_call.1} parent=1 // pred_check
      _
    $region27: #{tpu_custom_call.1} parent=1 // pred_check_branch
      %176 = sbr.rel (0) target = $region29
    $region28: #{tpu_custom_call.1} parent=1 // pred_region
      %s178 = ssub.s32 512, 512
      %179 = vsyncadd [#allocation4], %s178
      %s180 = sshll.u32 [#allocation7], 4
      %s181 = int_to_ptr.vmem [resolvable:$true] %s180
      %186 = dma.vmem_to_hbm [thread:$0]  %s181, 512, %s3, [#allocation4], 128, 128, 8
    $region29: #{tpu_custom_call.1} parent=1 // pred_fallthru
      _
    // Predicated region
    $region30: #{tpu_custom_call.1} parent=1 // pred_check
      _
    $region31: #{tpu_custom_call.1} parent=1 // pred_check_branch
      %188 = sbr.rel (0) target = $region33
    $region32: #{tpu_custom_call.1} parent=1 // pred_region
      %189 = dma.done [#allocation4], 512
    $region33: #{tpu_custom_call.1} parent=1 // pred_fallthru
      _
    %190 = vsyncpa [#allocation3], 1
    %191 = vsyncpa [#allocation6], 1
    %192 = vsyncpa [#allocation4], 1

</llo_original>
